<compile_context>
chip_gen: v7x
topology: tpu7x:2x2x1
jax: 0.10.0
libtpu: 0.0.40
codegen_flags: <defaults>
</compile_context>

<pallas_src>
import functools

import jax
import jax.numpy as jnp
from jax.experimental import pallas as pl
from jax.experimental.pallas import tpu as pltpu  # noqa: F401  (kept for parity with template)


def _shortcut_kernel(x_ref, o_ref):
    """Option-A shortcut: out = zero-channel-pad(x[:, :, ::2, ::2]).

    x_ref: (N, C_IN, H, W)            whole array, VMEM
    o_ref: (N, C_OUT, H_OUT, W_OUT)   whole array, VMEM, C_OUT = C_IN + 2*pad
    """
    n, c_in, h, w = x_ref.shape
    _, c_out, h_out, w_out = o_ref.shape
    pad = (c_out - c_in) // 2

    # Even rows (H, second-to-last dim): load only the needed rows from the
    # ref with static unit-stride slices, then concatenate along the sublane
    # side.  No strided loads.
    rows = [x_ref[:, :, 2 * i : 2 * i + 1, :] for i in range(h_out)]
    xh = rows[0] if h_out == 1 else jnp.concatenate(rows, axis=2)   # (N, C_IN, H_OUT, W)

    # Even columns (W, lane dim): static unit-stride 1-lane slices +
    # concatenate along the lane dim.  No lane-strided access, no gather.
    cols = [xh[..., 2 * j : 2 * j + 1] for j in range(w_out)]
    xs = cols[0] if w_out == 1 else jnp.concatenate(cols, axis=3)   # (N, C_IN, H_OUT, W_OUT)
    xs = xs.astype(o_ref.dtype)

    # Channel zero-padding: assemble [zeros | data | zeros] in registers and
    # store exactly once, directly in NCHW (no wrapper relayout needed).
    if pad == 0:
        o_ref[...] = xs
    else:
        zpad = jnp.zeros((n, pad, h_out, w_out), dtype=o_ref.dtype)
        o_ref[...] = jnp.concatenate([zpad, xs, zpad], axis=1)


@functools.partial(jax.jit, static_argnames=("planes",))
def lambda_layer(x, planes: int = 8):
    """Pallas TPU equivalent of LambdaLayer(option-A shortcut).forward(x)."""
    n, c_in, h, w = x.shape
    pad = planes // 4
    c_out = c_in + 2 * pad
    h_out = -(-h // 2)          # ceil, matches PyTorch ::2 for odd sizes
    w_out = -(-w // 2)

    # Gridless single invocation: whole arrays live in VMEM, no pipeline
    # prologue/epilogue, no wrapper-side reshapes or transposes.
    return pl.pallas_call(
        _shortcut_kernel,
        out_shape=jax.ShapeDtypeStruct((n, c_out, h_out, w_out), x.dtype),
    )(x)


def lambda_layer_ref(x, planes: int = 8):
    # Pure-JAX reference mirroring the PyTorch lambda:
    # F.pad(x[:, :, ::2, ::2], (0, 0, 0, 0, planes//4, planes//4), "constant", 0)
    pad = planes // 4
    y = x[:, :, ::2, ::2]
    return jnp.pad(y, ((0, 0), (pad, pad), (0, 0), (0, 0)))


if __name__ == "__main__":
    key = jax.random.PRNGKey(0)
    x = jax.random.normal(key, (2, 4, 16, 16), dtype=jnp.float32)

    out = jax.block_until_ready(lambda_layer(x, planes=8))
    ref = lambda_layer_ref(x, planes=8)

    assert out.shape == (2, 8, 8, 8), out.shape
    assert jnp.array_equal(out, ref), "mismatch vs reference"

    print("KERNEL_OK")
</pallas_src>

<mosaic_0001>
module attributes {stable_mosaic.version = 11 : i64} {
  func.func @_shortcut_kernel(%arg0: memref<2x4x16x16xf32, #tpu.memory_space<vmem>>, %arg1: memref<2x8x8x8xf32, #tpu.memory_space<vmem>>) attributes {dimension_semantics = [], scalar_prefetch = 0 : i64, scratch_operands = 0 : i64, tpu.core_type = #tpu.core_type<tc>} {
    %c0 = arith.constant 0 : index
    %c0_0 = arith.constant 0 : index
    %c0_1 = arith.constant 0 : index
    %c0_2 = arith.constant 0 : index
    %0 = vector.load %arg0[%c0, %c0_0, %c0_1, %c0_2] : memref<2x4x16x16xf32, #tpu.memory_space<vmem>>, vector<2x4x1x16xf32>
    %c0_3 = arith.constant 0 : index
    %c0_4 = arith.constant 0 : index
    %c2 = arith.constant 2 : index
    %c0_5 = arith.constant 0 : index
    %1 = vector.load %arg0[%c0_3, %c0_4, %c2, %c0_5] : memref<2x4x16x16xf32, #tpu.memory_space<vmem>>, vector<2x4x1x16xf32>
    %c0_6 = arith.constant 0 : index
    %c0_7 = arith.constant 0 : index
    %c4 = arith.constant 4 : index
    %c0_8 = arith.constant 0 : index
    %2 = vector.load %arg0[%c0_6, %c0_7, %c4, %c0_8] : memref<2x4x16x16xf32, #tpu.memory_space<vmem>>, vector<2x4x1x16xf32>
    %c0_9 = arith.constant 0 : index
    %c0_10 = arith.constant 0 : index
    %c6 = arith.constant 6 : index
    %c0_11 = arith.constant 0 : index
    %3 = vector.load %arg0[%c0_9, %c0_10, %c6, %c0_11] : memref<2x4x16x16xf32, #tpu.memory_space<vmem>>, vector<2x4x1x16xf32>
    %c0_12 = arith.constant 0 : index
    %c0_13 = arith.constant 0 : index
    %c8 = arith.constant 8 : index
    %c0_14 = arith.constant 0 : index
    %4 = vector.load %arg0[%c0_12, %c0_13, %c8, %c0_14] : memref<2x4x16x16xf32, #tpu.memory_space<vmem>>, vector<2x4x1x16xf32>
    %c0_15 = arith.constant 0 : index
    %c0_16 = arith.constant 0 : index
    %c10 = arith.constant 10 : index
    %c0_17 = arith.constant 0 : index
    %5 = vector.load %arg0[%c0_15, %c0_16, %c10, %c0_17] : memref<2x4x16x16xf32, #tpu.memory_space<vmem>>, vector<2x4x1x16xf32>
    %c0_18 = arith.constant 0 : index
    %c0_19 = arith.constant 0 : index
    %c12 = arith.constant 12 : index
    %c0_20 = arith.constant 0 : index
    %6 = vector.load %arg0[%c0_18, %c0_19, %c12, %c0_20] : memref<2x4x16x16xf32, #tpu.memory_space<vmem>>, vector<2x4x1x16xf32>
    %c0_21 = arith.constant 0 : index
    %c0_22 = arith.constant 0 : index
    %c14 = arith.constant 14 : index
    %c0_23 = arith.constant 0 : index
    %7 = vector.load %arg0[%c0_21, %c0_22, %c14, %c0_23] : memref<2x4x16x16xf32, #tpu.memory_space<vmem>>, vector<2x4x1x16xf32>
    %8 = tpu.concatenate %0, %1, %2, %3, %4, %5, %6, %7 in 2 : vector<2x4x1x16xf32>, vector<2x4x1x16xf32>, vector<2x4x1x16xf32>, vector<2x4x1x16xf32>, vector<2x4x1x16xf32>, vector<2x4x1x16xf32>, vector<2x4x1x16xf32>, vector<2x4x1x16xf32> -> vector<2x4x8x16xf32>
    %9 = vector.extract_strided_slice %8 {offsets = [0, 0, 0, 0], sizes = [2, 4, 8, 1], strides = [1, 1, 1, 1]} : vector<2x4x8x16xf32> to vector<2x4x8x1xf32>
    %10 = vector.extract_strided_slice %8 {offsets = [0, 0, 0, 2], sizes = [2, 4, 8, 1], strides = [1, 1, 1, 1]} : vector<2x4x8x16xf32> to vector<2x4x8x1xf32>
    %11 = vector.extract_strided_slice %8 {offsets = [0, 0, 0, 4], sizes = [2, 4, 8, 1], strides = [1, 1, 1, 1]} : vector<2x4x8x16xf32> to vector<2x4x8x1xf32>
    %12 = vector.extract_strided_slice %8 {offsets = [0, 0, 0, 6], sizes = [2, 4, 8, 1], strides = [1, 1, 1, 1]} : vector<2x4x8x16xf32> to vector<2x4x8x1xf32>
    %13 = vector.extract_strided_slice %8 {offsets = [0, 0, 0, 8], sizes = [2, 4, 8, 1], strides = [1, 1, 1, 1]} : vector<2x4x8x16xf32> to vector<2x4x8x1xf32>
    %14 = vector.extract_strided_slice %8 {offsets = [0, 0, 0, 10], sizes = [2, 4, 8, 1], strides = [1, 1, 1, 1]} : vector<2x4x8x16xf32> to vector<2x4x8x1xf32>
    %15 = vector.extract_strided_slice %8 {offsets = [0, 0, 0, 12], sizes = [2, 4, 8, 1], strides = [1, 1, 1, 1]} : vector<2x4x8x16xf32> to vector<2x4x8x1xf32>
    %16 = vector.extract_strided_slice %8 {offsets = [0, 0, 0, 14], sizes = [2, 4, 8, 1], strides = [1, 1, 1, 1]} : vector<2x4x8x16xf32> to vector<2x4x8x1xf32>
    %17 = tpu.concatenate %9, %10, %11, %12, %13, %14, %15, %16 in 3 : vector<2x4x8x1xf32>, vector<2x4x8x1xf32>, vector<2x4x8x1xf32>, vector<2x4x8x1xf32>, vector<2x4x8x1xf32>, vector<2x4x8x1xf32>, vector<2x4x8x1xf32>, vector<2x4x8x1xf32> -> vector<2x4x8x8xf32>
    %cst = arith.constant 0.000000e+00 : f32
    %18 = vector.broadcast %cst : f32 to vector<2x2x8x8xf32>
    %19 = tpu.concatenate %18, %17, %18 in 1 : vector<2x2x8x8xf32>, vector<2x4x8x8xf32>, vector<2x2x8x8xf32> -> vector<2x8x8x8xf32>
    %c0_24 = arith.constant 0 : index
    %c0_25 = arith.constant 0 : index
    %c0_26 = arith.constant 0 : index
    %c0_27 = arith.constant 0 : index
    %20 = vector.load %arg1[%c0_24, %c0_25, %c0_26, %c0_27] : memref<2x8x8x8xf32, #tpu.memory_space<vmem>>, vector<2x8x8x8xf32>
    tpu.vector_store %arg1[%c0_24, %c0_25, %c0_26, %c0_27], %19 {strides = array<i32>} : memref<2x8x8x8xf32, #tpu.memory_space<vmem>>, vector<2x8x8x8xf32>,
    return
  }
}

</mosaic_0001>

<llo_original>
// kernel: lambda_layer.1
$region0: #{lambda_layer.1}
  #allocation0 [shape = 'u32[]', space=smem, size = 0x4, offset = 0x4, fixed_abs, tag = 'smem constant byte address 0x4 - core index']
  #allocation1 [shape = 'u32[144,128]{1,0:T(1,128)}', space=vmem, size = 0x12000, scoped, tag = 'internal scratch']
  %s0 = inlined_call_operand.hbm [shape: f32[2,4,16,16], index: 0, kind: input, shape index: {}]
  %s1 = inlined_call_operand.hbm [shape: f32[2,8,8,8], index: 1, kind: output, shape index: {}]
  %s2 = sld [smem:[#allocation0]]
  $region18: #{lambda_layer.1} parent=0
    _
  %s4 = ssub.s32 1, %s2
  %s5 = scalar_select 0, %s4, %s2
  $region1: #{lambda_layer.1} parent=0
    #allocation2 [shape = 'u8[65536]{0}', space=vmem, size = 0x10000, scoped, tag = 'input window, operand 0, single buffered']
    #allocation3 [shape = 's32[1]{0}', space=sflag, size = 0x4, scoped, tag = 'scoped memory for lambda_layer.1']
    #allocation4 [shape = 's32[1]{0}', space=sflag, size = 0x4, scoped, tag = 'scoped memory for lambda_layer.1']
    #allocation5 [shape = 'u8[65536]{0}', space=vmem, size = 0x10000, scoped, tag = 'output window, operand 0, single buffered']
    %6 = vsyncpa [#allocation3], 0
    %7 = vsyncpa [#allocation4], 0
    // Predicated region
    $region2: #{lambda_layer.1} parent=1 // pred_check
      _
    $region3: #{lambda_layer.1} parent=1 // pred_check_branch
      %9 = sbr.rel (0) target = $region5
    $region4: #{lambda_layer.1} parent=1 // pred_region
      %s11 = ssub.s32 2048, 2048
      %12 = vsyncadd [#allocation3], %s11
      %s13 = sshll.u32 [#allocation2], 4
      %s14 = int_to_ptr.vmem [resolvable:$true] %s13
      %19 = dma.hbm_to_vmem [thread:$0]  %s0, 2048, %s14, [#allocation3], 128, 128, 8
    $region5: #{lambda_layer.1} parent=1 // pred_fallthru
      _
    // Predicated region
    $region6: #{lambda_layer.1} parent=1 // pred_check
      _
    $region7: #{lambda_layer.1} parent=1 // pred_check_branch
      %21 = sbr.rel (0) target = $region9
    $region8: #{lambda_layer.1} parent=1 // pred_region
      %22 = dma.done [#allocation3], 2048
    $region9: #{lambda_layer.1} parent=1 // pred_fallthru
      _
    %v23 = vld [vmem:[#allocation2] sm:$0x1]
    %v24 = vld [vmem:[#allocation2 + $0x10] sm:$0x1]
    %v25 = vld [vmem:[#allocation2 + $0x20] sm:$0x1]
    %v26 = vld [vmem:[#allocation2 + $0x30] sm:$0x1]
    %v27 = vld [vmem:[#allocation2 + $0x40] sm:$0x1]
    %v28 = vld [vmem:[#allocation2 + $0x50] sm:$0x1]
    %v29 = vld [vmem:[#allocation2 + $0x60] sm:$0x1]
    %v30 = vld [vmem:[#allocation2 + $0x70] sm:$0x1]
    %v31 = vld [vmem:[#allocation2 + $0x2] sm:$0x1]
    %v32 = vld [vmem:[#allocation2 + $0x12] sm:$0x1]
    %v33 = vld [vmem:[#allocation2 + $0x22] sm:$0x1]
    %v34 = vld [vmem:[#allocation2 + $0x32] sm:$0x1]
    %v35 = vld [vmem:[#allocation2 + $0x42] sm:$0x1]
    %v36 = vld [vmem:[#allocation2 + $0x52] sm:$0x1]
    %v37 = vld [vmem:[#allocation2 + $0x62] sm:$0x1]
    %v38 = vld [vmem:[#allocation2 + $0x72] sm:$0x1]
    %v39 = vld [vmem:[#allocation2 + $0x4] sm:$0x1]
    %v40 = vld [vmem:[#allocation2 + $0x14] sm:$0x1]
    %v41 = vld [vmem:[#allocation2 + $0x24] sm:$0x1]
    %v42 = vld [vmem:[#allocation2 + $0x34] sm:$0x1]
    %v43 = vld [vmem:[#allocation2 + $0x44] sm:$0x1]
    %v44 = vld [vmem:[#allocation2 + $0x54] sm:$0x1]
    %v45 = vld [vmem:[#allocation2 + $0x64] sm:$0x1]
    %v46 = vld [vmem:[#allocation2 + $0x74] sm:$0x1]
    %v47 = vld [vmem:[#allocation2 + $0x6] sm:$0x1]
    %v48 = vld [vmem:[#allocation2 + $0x16] sm:$0x1]
    %v49 = vld [vmem:[#allocation2 + $0x26] sm:$0x1]
    %v50 = vld [vmem:[#allocation2 + $0x36] sm:$0x1]
    %v51 = vld [vmem:[#allocation2 + $0x46] sm:$0x1]
    %v52 = vld [vmem:[#allocation2 + $0x56] sm:$0x1]
    %v53 = vld [vmem:[#allocation2 + $0x66] sm:$0x1]
    %v54 = vld [vmem:[#allocation2 + $0x76] sm:$0x1]
    %v55 = vld [vmem:[#allocation2 + $0x8] sm:$0x1]
    %v56 = vld [vmem:[#allocation2 + $0x18] sm:$0x1]
    %v57 = vld [vmem:[#allocation2 + $0x28] sm:$0x1]
    %v58 = vld [vmem:[#allocation2 + $0x38] sm:$0x1]
    %v59 = vld [vmem:[#allocation2 + $0x48] sm:$0x1]
    %v60 = vld [vmem:[#allocation2 + $0x58] sm:$0x1]
    %v61 = vld [vmem:[#allocation2 + $0x68] sm:$0x1]
    %v62 = vld [vmem:[#allocation2 + $0x78] sm:$0x1]
    %v63 = vld [vmem:[#allocation2 + $0xa] sm:$0x1]
    %v64 = vld [vmem:[#allocation2 + $0x1a] sm:$0x1]
    %v65 = vld [vmem:[#allocation2 + $0x2a] sm:$0x1]
    %v66 = vld [vmem:[#allocation2 + $0x3a] sm:$0x1]
    %v67 = vld [vmem:[#allocation2 + $0x4a] sm:$0x1]
    %v68 = vld [vmem:[#allocation2 + $0x5a] sm:$0x1]
    %v69 = vld [vmem:[#allocation2 + $0x6a] sm:$0x1]
    %v70 = vld [vmem:[#allocation2 + $0x7a] sm:$0x1]
    %v71 = vld [vmem:[#allocation2 + $0xc] sm:$0x1]
    %v72 = vld [vmem:[#allocation2 + $0x1c] sm:$0x1]
    %v73 = vld [vmem:[#allocation2 + $0x2c] sm:$0x1]
    %v74 = vld [vmem:[#allocation2 + $0x3c] sm:$0x1]
    %v75 = vld [vmem:[#allocation2 + $0x4c] sm:$0x1]
    %v76 = vld [vmem:[#allocation2 + $0x5c] sm:$0x1]
    %v77 = vld [vmem:[#allocation2 + $0x6c] sm:$0x1]
    %v78 = vld [vmem:[#allocation2 + $0x7c] sm:$0x1]
    %v79 = vld [vmem:[#allocation2 + $0xe] sm:$0x1]
    %v80 = vld [vmem:[#allocation2 + $0x1e] sm:$0x1]
    %v81 = vld [vmem:[#allocation2 + $0x2e] sm:$0x1]
    %v82 = vld [vmem:[#allocation2 + $0x3e] sm:$0x1]
    %v83 = vld [vmem:[#allocation2 + $0x4e] sm:$0x1]
    %v84 = vld [vmem:[#allocation2 + $0x5e] sm:$0x1]
    %v85 = vld [vmem:[#allocation2 + $0x6e] sm:$0x1]
    %v86 = vld [vmem:[#allocation2 + $0x7e] sm:$0x1]
    %v95 = vrot.slane %v31, 7
    %v96 = vrot.slane %v32, 7
    %v97 = vrot.slane %v33, 7
    %v98 = vrot.slane %v34, 7
    %v99 = vrot.slane %v35, 7
    %v100 = vrot.slane %v36, 7
    %v101 = vrot.slane %v37, 7
    %v102 = vrot.slane %v38, 7
    %v119 = vrot.slane %v39, 6
    %v120 = vrot.slane %v40, 6
    %v121 = vrot.slane %v41, 6
    %v122 = vrot.slane %v42, 6
    %v123 = vrot.slane %v43, 6
    %v124 = vrot.slane %v44, 6
    %v125 = vrot.slane %v45, 6
    %v126 = vrot.slane %v46, 6
    %v143 = vrot.slane %v47, 5
    %v144 = vrot.slane %v48, 5
    %v145 = vrot.slane %v49, 5
    %v146 = vrot.slane %v50, 5
    %v147 = vrot.slane %v51, 5
    %v148 = vrot.slane %v52, 5
    %v149 = vrot.slane %v53, 5
    %v150 = vrot.slane %v54, 5
    %v167 = vrot.slane %v55, 4
    %v168 = vrot.slane %v56, 4
    %v169 = vrot.slane %v57, 4
    %v170 = vrot.slane %v58, 4
    %v171 = vrot.slane %v59, 4
    %v172 = vrot.slane %v60, 4
    %v173 = vrot.slane %v61, 4
    %v174 = vrot.slane %v62, 4
    %v191 = vrot.slane %v63, 3
    %v192 = vrot.slane %v64, 3
    %v193 = vrot.slane %v65, 3
    %v194 = vrot.slane %v66, 3
    %v195 = vrot.slane %v67, 3
    %v196 = vrot.slane %v68, 3
    %v197 = vrot.slane %v69, 3
    %v198 = vrot.slane %v70, 3
    %v215 = vrot.slane %v71, 2
    %v216 = vrot.slane %v72, 2
    %v217 = vrot.slane %v73, 2
    %v218 = vrot.slane %v74, 2
    %v219 = vrot.slane %v75, 2
    %v220 = vrot.slane %v76, 2
    %v221 = vrot.slane %v77, 2
    %v222 = vrot.slane %v78, 2
    %v239 = vrot.slane %v79, 1
    %v240 = vrot.slane %v80, 1
    %v241 = vrot.slane %v81, 1
    %v242 = vrot.slane %v82, 1
    %v243 = vrot.slane %v83, 1
    %v244 = vrot.slane %v84, 1
    %v245 = vrot.slane %v85, 1
    %v246 = vrot.slane %v86, 1
    %vm255 = vcmask 1040384
    %v256 = vsel %vm255, %v23, %v95
    %v257 = vsel %vm255, %v24, %v96
    %v258 = vsel %vm255, %v25, %v97
    %v259 = vsel %vm255, %v26, %v98
    %v260 = vsel %vm255, %v27, %v99
    %v261 = vsel %vm255, %v28, %v100
    %v262 = vsel %vm255, %v29, %v101
    %v263 = vsel %vm255, %v30, %v102
    %vm264 = vcmask 1041408
    %v265 = vsel %vm264, %v256, %v119
    %v266 = vsel %vm264, %v257, %v120
    %v267 = vsel %vm264, %v258, %v121
    %v268 = vsel %vm264, %v259, %v122
    %v269 = vsel %vm264, %v260, %v123
    %v270 = vsel %vm264, %v261, %v124
    %v271 = vsel %vm264, %v262, %v125
    %v272 = vsel %vm264, %v263, %v126
    %vm273 = vcmask 1042432
    %v274 = vsel %vm273, %v265, %v143
    %v275 = vsel %vm273, %v266, %v144
    %v276 = vsel %vm273, %v267, %v145
    %v277 = vsel %vm273, %v268, %v146
    %v278 = vsel %vm273, %v269, %v147
    %v279 = vsel %vm273, %v270, %v148
    %v280 = vsel %vm273, %v271, %v149
    %v281 = vsel %vm273, %v272, %v150
    %vm282 = vcmask 1043456
    %v283 = vsel %vm282, %v274, %v167
    %v284 = vsel %vm282, %v275, %v168
    %v285 = vsel %vm282, %v276, %v169
    %v286 = vsel %vm282, %v277, %v170
    %v287 = vsel %vm282, %v278, %v171
    %v288 = vsel %vm282, %v279, %v172
    %v289 = vsel %vm282, %v280, %v173
    %v290 = vsel %vm282, %v281, %v174
    %vm291 = vcmask 1044480
    %v292 = vsel %vm291, %v283, %v191
    %v293 = vsel %vm291, %v284, %v192
    %v294 = vsel %vm291, %v285, %v193
    %v295 = vsel %vm291, %v286, %v194
    %v296 = vsel %vm291, %v287, %v195
    %v297 = vsel %vm291, %v288, %v196
    %v298 = vsel %vm291, %v289, %v197
    %v299 = vsel %vm291, %v290, %v198
    %vm300 = vcmask 1045504
    %v301 = vsel %vm300, %v292, %v215
    %v302 = vsel %vm300, %v293, %v216
    %v303 = vsel %vm300, %v294, %v217
    %v304 = vsel %vm300, %v295, %v218
    %v305 = vsel %vm300, %v296, %v219
    %v306 = vsel %vm300, %v297, %v220
    %v307 = vsel %vm300, %v298, %v221
    %v308 = vsel %vm300, %v299, %v222
    %vm309 = vcmask 1046528
    %v310 = vsel %vm309, %v301, %v239
    %v311 = vsel %vm309, %v302, %v240
    %v312 = vsel %vm309, %v303, %v241
    %v313 = vsel %vm309, %v304, %v242
    %v314 = vsel %vm309, %v305, %v243
    %v315 = vsel %vm309, %v306, %v244
    %v316 = vsel %vm309, %v307, %v245
    %v317 = vsel %vm309, %v308, %v246
    %326 = vrot.lane.b32.xlu0 %v310, 127
    %v327 = vpop.permute.xlu0 %326
    %328 = vrot.lane.b32.xlu0 %v311, 127
    %v329 = vpop.permute.xlu0 %328
    %330 = vrot.lane.b32.xlu0 %v312, 127
    %v331 = vpop.permute.xlu0 %330
    %332 = vrot.lane.b32.xlu0 %v313, 127
    %v333 = vpop.permute.xlu0 %332
    %334 = vrot.lane.b32.xlu0 %v314, 127
    %v335 = vpop.permute.xlu0 %334
    %336 = vrot.lane.b32.xlu0 %v315, 127
    %v337 = vpop.permute.xlu0 %336
    %338 = vrot.lane.b32.xlu0 %v316, 127
    %v339 = vpop.permute.xlu0 %338
    %340 = vrot.lane.b32.xlu0 %v317, 127
    %v341 = vpop.permute.xlu0 %340
    %350 = vrot.lane.b32.xlu0 %v310, 126
    %v351 = vpop.permute.xlu0 %350
    %352 = vrot.lane.b32.xlu0 %v311, 126
    %v353 = vpop.permute.xlu0 %352
    %354 = vrot.lane.b32.xlu0 %v312, 126
    %v355 = vpop.permute.xlu0 %354
    %356 = vrot.lane.b32.xlu0 %v313, 126
    %v357 = vpop.permute.xlu0 %356
    %358 = vrot.lane.b32.xlu0 %v314, 126
    %v359 = vpop.permute.xlu0 %358
    %360 = vrot.lane.b32.xlu0 %v315, 126
    %v361 = vpop.permute.xlu0 %360
    %362 = vrot.lane.b32.xlu0 %v316, 126
    %v363 = vpop.permute.xlu0 %362
    %364 = vrot.lane.b32.xlu0 %v317, 126
    %v365 = vpop.permute.xlu0 %364
    %374 = vrot.lane.b32.xlu0 %v310, 125
    %v375 = vpop.permute.xlu0 %374
    %376 = vrot.lane.b32.xlu0 %v311, 125
    %v377 = vpop.permute.xlu0 %376
    %378 = vrot.lane.b32.xlu0 %v312, 125
    %v379 = vpop.permute.xlu0 %378
    %380 = vrot.lane.b32.xlu0 %v313, 125
    %v381 = vpop.permute.xlu0 %380
    %382 = vrot.lane.b32.xlu0 %v314, 125
    %v383 = vpop.permute.xlu0 %382
    %384 = vrot.lane.b32.xlu0 %v315, 125
    %v385 = vpop.permute.xlu0 %384
    %386 = vrot.lane.b32.xlu0 %v316, 125
    %v387 = vpop.permute.xlu0 %386
    %388 = vrot.lane.b32.xlu0 %v317, 125
    %v389 = vpop.permute.xlu0 %388
    %398 = vrot.lane.b32.xlu0 %v310, 124
    %v399 = vpop.permute.xlu0 %398
    %400 = vrot.lane.b32.xlu0 %v311, 124
    %v401 = vpop.permute.xlu0 %400
    %402 = vrot.lane.b32.xlu0 %v312, 124
    %v403 = vpop.permute.xlu0 %402
    %404 = vrot.lane.b32.xlu0 %v313, 124
    %v405 = vpop.permute.xlu0 %404
    %406 = vrot.lane.b32.xlu0 %v314, 124
    %v407 = vpop.permute.xlu0 %406
    %408 = vrot.lane.b32.xlu0 %v315, 124
    %v409 = vpop.permute.xlu0 %408
    %410 = vrot.lane.b32.xlu0 %v316, 124
    %v411 = vpop.permute.xlu0 %410
    %412 = vrot.lane.b32.xlu0 %v317, 124
    %v413 = vpop.permute.xlu0 %412
    %422 = vrot.lane.b32.xlu0 %v310, 123
    %v423 = vpop.permute.xlu0 %422
    %424 = vrot.lane.b32.xlu0 %v311, 123
    %v425 = vpop.permute.xlu0 %424
    %426 = vrot.lane.b32.xlu0 %v312, 123
    %v427 = vpop.permute.xlu0 %426
    %428 = vrot.lane.b32.xlu0 %v313, 123
    %v429 = vpop.permute.xlu0 %428
    %430 = vrot.lane.b32.xlu0 %v314, 123
    %v431 = vpop.permute.xlu0 %430
    %432 = vrot.lane.b32.xlu0 %v315, 123
    %v433 = vpop.permute.xlu0 %432
    %434 = vrot.lane.b32.xlu0 %v316, 123
    %v435 = vpop.permute.xlu0 %434
    %436 = vrot.lane.b32.xlu0 %v317, 123
    %v437 = vpop.permute.xlu0 %436
    %446 = vrot.lane.b32.xlu0 %v310, 122
    %v447 = vpop.permute.xlu0 %446
    %448 = vrot.lane.b32.xlu0 %v311, 122
    %v449 = vpop.permute.xlu0 %448
    %450 = vrot.lane.b32.xlu0 %v312, 122
    %v451 = vpop.permute.xlu0 %450
    %452 = vrot.lane.b32.xlu0 %v313, 122
    %v453 = vpop.permute.xlu0 %452
    %454 = vrot.lane.b32.xlu0 %v314, 122
    %v455 = vpop.permute.xlu0 %454
    %456 = vrot.lane.b32.xlu0 %v315, 122
    %v457 = vpop.permute.xlu0 %456
    %458 = vrot.lane.b32.xlu0 %v316, 122
    %v459 = vpop.permute.xlu0 %458
    %460 = vrot.lane.b32.xlu0 %v317, 122
    %v461 = vpop.permute.xlu0 %460
    %470 = vrot.lane.b32.xlu0 %v310, 121
    %v471 = vpop.permute.xlu0 %470
    %472 = vrot.lane.b32.xlu0 %v311, 121
    %v473 = vpop.permute.xlu0 %472
    %474 = vrot.lane.b32.xlu0 %v312, 121
    %v475 = vpop.permute.xlu0 %474
    %476 = vrot.lane.b32.xlu0 %v313, 121
    %v477 = vpop.permute.xlu0 %476
    %478 = vrot.lane.b32.xlu0 %v314, 121
    %v479 = vpop.permute.xlu0 %478
    %480 = vrot.lane.b32.xlu0 %v315, 121
    %v481 = vpop.permute.xlu0 %480
    %482 = vrot.lane.b32.xlu0 %v316, 121
    %v483 = vpop.permute.xlu0 %482
    %484 = vrot.lane.b32.xlu0 %v317, 121
    %v485 = vpop.permute.xlu0 %484
    %vm494 = vcmask 7168
    %v495 = vsel %vm494, %v310, %v327
    %v496 = vsel %vm494, %v311, %v329
    %v497 = vsel %vm494, %v312, %v331
    %v498 = vsel %vm494, %v313, %v333
    %v499 = vsel %vm494, %v314, %v335
    %v500 = vsel %vm494, %v315, %v337
    %v501 = vsel %vm494, %v316, %v339
    %v502 = vsel %vm494, %v317, %v341
    %vm503 = vcmask 15360
    %v504 = vsel %vm503, %v495, %v351
    %v505 = vsel %vm503, %v496, %v353
    %v506 = vsel %vm503, %v497, %v355
    %v507 = vsel %vm503, %v498, %v357
    %v508 = vsel %vm503, %v499, %v359
    %v509 = vsel %vm503, %v500, %v361
    %v510 = vsel %vm503, %v501, %v363
    %v511 = vsel %vm503, %v502, %v365
    %vm512 = vcmask 23552
    %v513 = vsel %vm512, %v504, %v375
    %v514 = vsel %vm512, %v505, %v377
    %v515 = vsel %vm512, %v506, %v379
    %v516 = vsel %vm512, %v507, %v381
    %v517 = vsel %vm512, %v508, %v383
    %v518 = vsel %vm512, %v509, %v385
    %v519 = vsel %vm512, %v510, %v387
    %v520 = vsel %vm512, %v511, %v389
    %vm521 = vcmask 31744
    %v522 = vsel %vm521, %v513, %v399
    %v523 = vsel %vm521, %v514, %v401
    %v524 = vsel %vm521, %v515, %v403
    %v525 = vsel %vm521, %v516, %v405
    %v526 = vsel %vm521, %v517, %v407
    %v527 = vsel %vm521, %v518, %v409
    %v528 = vsel %vm521, %v519, %v411
    %v529 = vsel %vm521, %v520, %v413
    %vm530 = vcmask 39936
    %v531 = vsel %vm530, %v522, %v423
    %v532 = vsel %vm530, %v523, %v425
    %v533 = vsel %vm530, %v524, %v427
    %v534 = vsel %vm530, %v525, %v429
    %v535 = vsel %vm530, %v526, %v431
    %v536 = vsel %vm530, %v527, %v433
    %v537 = vsel %vm530, %v528, %v435
    %v538 = vsel %vm530, %v529, %v437
    %vm539 = vcmask 48128
    %v540 = vsel %vm539, %v531, %v447
    %v541 = vsel %vm539, %v532, %v449
    %v542 = vsel %vm539, %v533, %v451
    %v543 = vsel %vm539, %v534, %v453
    %v544 = vsel %vm539, %v535, %v455
    %v545 = vsel %vm539, %v536, %v457
    %v546 = vsel %vm539, %v537, %v459
    %v547 = vsel %vm539, %v538, %v461
    %vm548 = vcmask 56320
    %v549 = vsel %vm548, %v540, %v471
    %v550 = vsel %vm548, %v541, %v473
    %v551 = vsel %vm548, %v542, %v475
    %v552 = vsel %vm548, %v543, %v477
    %v553 = vsel %vm548, %v544, %v479
    %v554 = vsel %vm548, %v545, %v481
    %v555 = vsel %vm548, %v546, %v483
    %v556 = vsel %vm548, %v547, %v485
    %vm557 = vcmask 64512
    %558 = vst.msk [vmem:[#allocation5] sm:$0xff] %vm557, 0.0
    %559 = vst.msk [vmem:[#allocation5 + $0x8] sm:$0xff] %vm557, 0.0
    %560 = vst.msk [vmem:[#allocation5 + $0x10] sm:$0xff] %vm557, %v549
    %561 = vst.msk [vmem:[#allocation5 + $0x18] sm:$0xff] %vm557, %v550
    %562 = vst.msk [vmem:[#allocation5 + $0x20] sm:$0xff] %vm557, %v551
    %563 = vst.msk [vmem:[#allocation5 + $0x28] sm:$0xff] %vm557, %v552
    %564 = vst.msk [vmem:[#allocation5 + $0x30] sm:$0xff] %vm557, 0.0
    %565 = vst.msk [vmem:[#allocation5 + $0x38] sm:$0xff] %vm557, 0.0
    %566 = vst.msk [vmem:[#allocation5 + $0x40] sm:$0xff] %vm557, 0.0
    %567 = vst.msk [vmem:[#allocation5 + $0x48] sm:$0xff] %vm557, 0.0
    %568 = vst.msk [vmem:[#allocation5 + $0x50] sm:$0xff] %vm557, %v553
    %569 = vst.msk [vmem:[#allocation5 + $0x58] sm:$0xff] %vm557, %v554
    %570 = vst.msk [vmem:[#allocation5 + $0x60] sm:$0xff] %vm557, %v555
    %571 = vst.msk [vmem:[#allocation5 + $0x68] sm:$0xff] %vm557, %v556
    %572 = vst.msk [vmem:[#allocation5 + $0x70] sm:$0xff] %vm557, 0.0
    %573 = vst.msk [vmem:[#allocation5 + $0x78] sm:$0xff] %vm557, 0.0
    // Predicated region
    $region10: #{lambda_layer.1} parent=1 // pred_check
      _
    $region11: #{lambda_layer.1} parent=1 // pred_check_branch
      %575 = sbr.rel (0) target = $region13
    $region12: #{lambda_layer.1} parent=1 // pred_region
      %s577 = ssub.s32 2048, 2048
      %578 = vsyncadd [#allocation4], %s577
      %s579 = sshll.u32 [#allocation5], 4
      %s580 = int_to_ptr.vmem [resolvable:$true] %s579
      %585 = dma.vmem_to_hbm [thread:$0]  %s580, 2048, %s1, [#allocation4], 128, 128, 8
    $region13: #{lambda_layer.1} parent=1 // pred_fallthru
      _
    // Predicated region
    $region14: #{lambda_layer.1} parent=1 // pred_check
      _
    $region15: #{lambda_layer.1} parent=1 // pred_check_branch
      %587 = sbr.rel (0) target = $region17
    $region16: #{lambda_layer.1} parent=1 // pred_region
      %588 = dma.done [#allocation4], 2048
    $region17: #{lambda_layer.1} parent=1 // pred_fallthru
      _
    %589 = vsyncpa [#allocation3], 1
    %590 = vsyncpa [#allocation4], 1

</llo_original>
